<compile_context>
chip_gen: v7x
topology: tpu7x:2x2x1
jax: 0.10.0
libtpu: 0.0.40
codegen_flags: <defaults>
</compile_context>

<pallas_src>
import functools

import jax
import jax.numpy as jnp
from jax.experimental import pallas as pl
from jax.experimental.pallas import tpu as pltpu


def _round_up(x, m):
    return ((x + m - 1) // m) * m


def _choose_tb(B):
    """Batch tile: big enough to amortize per-step overhead, >=2 blocks for
    very large batches so the 'parallel' axis can shard across v7x's 2 TCs."""
    TB = min(4096, _round_up(B, 8))
    if B >= 2048 and pl.cdiv(B, TB) < 2:
        TB = _round_up(pl.cdiv(B, 2), 8)
    return TB


def _actor_kernel(x_ref, w1_ref, w2_ref, w3_ref, b_ref, o_ref, *, n_hidden, n_actions):
    # Sublane-packed bias table: row 0 = b1, row 1 = b2, row 2 = b3 (padded).
    b1 = b_ref[0:1, 0:n_hidden]
    b2 = b_ref[1:2, 0:n_hidden]
    b3 = b_ref[2:3, 0:n_actions]

    # x streams in as f32; cast to bf16 in-kernel (idle VPU) so the MXU runs
    # bf16 passes without a separate XLA cast pass over HBM.
    x = x_ref[...].astype(jnp.bfloat16)  # [TB, n_states]

    # lin1 -> relu   (bf16 matmul, f32 accumulate + epilogue)
    h1 = jnp.dot(x, w1_ref[...], preferred_element_type=jnp.float32) + b1
    h1 = jnp.maximum(h1, 0.0).astype(jnp.bfloat16)
    # lin2 -> relu
    h2 = jnp.dot(h1, w2_ref[...], preferred_element_type=jnp.float32) + b2
    h2 = jnp.maximum(h2, 0.0).astype(jnp.bfloat16)
    # lin3 -> tanh
    h3 = jnp.dot(h2, w3_ref[...], preferred_element_type=jnp.float32) + b3
    # TODO(synk): n_actions < 128 forces masked vst.msk stores; if profiling at
    # very large B shows the store slot / writeback as the residual bottleneck,
    # pack outputs lane-dense ((TB*n_actions/128, 128) slab) and reshape outside.
    o_ref[...] = jnp.tanh(h3).astype(o_ref.dtype)


@jax.jit
def actor_forward(x, w1, b1, w2, b2, w3, b3):
    """Actor MLP forward (no batch/layer norm, matching default ctor args).

    x:  [B, n_states]           (float32)
    w1: [n_states, n_hidden],  b1: [1, n_hidden]
    w2: [n_hidden, n_hidden],  b2: [1, n_hidden]
    w3: [n_hidden, n_actions], b3: [1, n_actions]
    returns [B, n_actions] float32
    """
    B, n_states = x.shape
    n_hidden = w1.shape[1]
    n_actions = w3.shape[1]

    TB = _choose_tb(B)
    n_blocks = pl.cdiv(B, TB)  # ragged last block is bounds-masked by Pallas

    # Small, grid-resident operands: bf16 weights + packed f32 bias table.
    w1b = w1.astype(jnp.bfloat16)
    w2b = w2.astype(jnp.bfloat16)
    w3b = w3.astype(jnp.bfloat16)

    h_pad = max(n_hidden, n_actions)

    def _row(b):
        b = b.astype(jnp.float32).reshape(1, -1)
        return jnp.pad(b, ((0, 0), (0, h_pad - b.shape[1])))

    b_packed = jnp.concatenate([_row(b1), _row(b2), _row(b3)], axis=0)  # [3, h_pad]

    kernel = functools.partial(_actor_kernel, n_hidden=n_hidden, n_actions=n_actions)

    out = pl.pallas_call(
        kernel,
        out_shape=jax.ShapeDtypeStruct((B, n_actions), jnp.float32),
        grid=(n_blocks,),
        in_specs=[
            # activations stream over the batch grid (f32, cast in-kernel)
            pl.BlockSpec((TB, n_states), lambda i: (i, 0)),
            # weights / biases: same block every step -> fetched once, resident
            pl.BlockSpec((n_states, n_hidden), lambda i: (0, 0)),
            pl.BlockSpec((n_hidden, n_hidden), lambda i: (0, 0)),
            pl.BlockSpec((n_hidden, n_actions), lambda i: (0, 0)),
            pl.BlockSpec((3, h_pad), lambda i: (0, 0)),
        ],
        out_specs=pl.BlockSpec((TB, n_actions), lambda i: (i, 0)),
        compiler_params=pltpu.CompilerParams(
            dimension_semantics=("parallel",),
            # Guardrail (esp. v7x 64 MiB physical): at TB=4096 the double-
            # buffered x/out blocks + f32 temporaries are well under 32 MiB.
            vmem_limit_bytes=32 * 1024 * 1024,
        ),
    )(x.astype(jnp.float32), w1b, w2b, w3b, b_packed)

    return out


def _xavier_uniform(key, fan_in, fan_out):
    # Matches torch.nn.init.xavier_uniform_ (gain=1): U(-a, a), a = sqrt(6/(fan_in+fan_out)).
    a = (6.0 / (fan_in + fan_out)) ** 0.5
    # Return in [in, out] layout (already transposed relative to torch's [out, in]).
    return jax.random.uniform(key, (fan_in, fan_out), jnp.float32, minval=-a, maxval=a)


def _linear_bias_init(key, fan_in, fan_out):
    # PyTorch nn.Linear default bias init: U(-1/sqrt(fan_in), 1/sqrt(fan_in)).
    bound = 1.0 / (fan_in ** 0.5)
    return jax.random.uniform(key, (1, fan_out), jnp.float32, minval=-bound, maxval=bound)


def make_actor_params(key, n_states, n_actions, n_hidden):
    k1, k2, k3, kb1, kb2, kb3 = jax.random.split(key, 6)
    w1 = _xavier_uniform(k1, n_states, n_hidden)
    b1 = _linear_bias_init(kb1, n_states, n_hidden)
    w2 = _xavier_uniform(k2, n_hidden, n_hidden)
    b2 = _linear_bias_init(kb2, n_hidden, n_hidden)
    w3 = _xavier_uniform(k3, n_hidden, n_actions)
    b3 = _linear_bias_init(kb3, n_hidden, n_actions)
    return w1, b1, w2, b2, w3, b3


def actor_forward_ref(x, w1, b1, w2, b2, w3, b3):
    h1 = jnp.maximum(x @ w1 + b1, 0.0)
    h2 = jnp.maximum(h1 @ w2 + b2, 0.0)
    return jnp.tanh(h2 @ w3 + b3)


if __name__ == "__main__":
    # Small shapes consistent with Actor(n_states, n_actions, n_hidden)
    batch = 8
    n_states = 16
    n_actions = 4
    n_hidden = 32

    key = jax.random.PRNGKey(0)
    kx, kp = jax.random.split(key)
    x = jax.random.normal(kx, (batch, n_states), jnp.float32)
    params = make_actor_params(kp, n_states, n_actions, n_hidden)

    out = actor_forward(x, *params)
    out = jax.block_until_ready(out)

    ref = actor_forward_ref(x, *params)
    assert out.shape == (batch, n_actions)
    # bf16 matmul inputs => looser tolerance than pure-f32 (tanh output is O(1)).
    assert jnp.allclose(out, ref, atol=3e-2, rtol=3e-2), "mismatch vs JAX reference"

    # Ragged batch (single block, bounds-masked tail rows).
    x2 = jax.random.normal(kx, (37, n_states), jnp.float32)
    out2 = jax.block_until_ready(actor_forward(x2, *params))
    ref2 = actor_forward_ref(x2, *params)
    assert out2.shape == (37, n_actions)
    assert jnp.allclose(out2, ref2, atol=3e-2, rtol=3e-2), "mismatch (ragged batch)"

    # Multi-block grid with a ragged last block (exercises the parallel axis
    # and Pallas output masking without any wrapper pad/slice).
    x3 = jax.random.normal(kx, (4100, n_states), jnp.float32)
    out3 = jax.block_until_ready(actor_forward(x3, *params))
    ref3 = actor_forward_ref(x3, *params)
    assert out3.shape == (4100, n_actions)
    assert jnp.allclose(out3, ref3, atol=3e-2, rtol=3e-2), "mismatch (multi-block)"

    print("KERNEL_OK")
</pallas_src>

<mosaic_0001>
module attributes {stable_mosaic.version = 11 : i64} {
  func.func @_actor_kernel(%arg0: i32, %arg1: memref<8x16xf32, #tpu.memory_space<vmem>>, %arg2: memref<16x32xbf16, #tpu.memory_space<vmem>>, %arg3: memref<32x32xbf16, #tpu.memory_space<vmem>>, %arg4: memref<32x4xbf16, #tpu.memory_space<vmem>>, %arg5: memref<3x32xf32, #tpu.memory_space<vmem>>, %arg6: memref<8x4xf32, #tpu.memory_space<vmem>>) attributes {dimension_semantics = [#tpu.dimension_semantics<parallel>], iteration_bounds = array<i64: 1>, scalar_prefetch = 0 : i64, scratch_operands = 0 : i64, tpu.core_type = #tpu.core_type<tc>, window_params = [{transform_indices = @transform_0, window_bounds = array<i64: 8, 16>}, {pipeline_mode = #tpu.pipeline_mode<synchronous>, transform_indices = @transform_1, window_bounds = array<i64: 16, 32>}, {pipeline_mode = #tpu.pipeline_mode<synchronous>, transform_indices = @transform_2, window_bounds = array<i64: 32, 32>}, {pipeline_mode = #tpu.pipeline_mode<synchronous>, transform_indices = @transform_3, window_bounds = array<i64: 32, 4>}, {pipeline_mode = #tpu.pipeline_mode<synchronous>, transform_indices = @transform_4, window_bounds = array<i64: 3, 32>}, {transform_indices = @transform_5, window_bounds = array<i64: 8, 4>}]} {
    %c0 = arith.constant 0 : index
    %c0_0 = arith.constant 0 : index
    %0 = vector.load %arg5[%c0, %c0_0] : memref<3x32xf32, #tpu.memory_space<vmem>>, vector<1x32xf32>
    %c1 = arith.constant 1 : index
    %c0_1 = arith.constant 0 : index
    %1 = vector.load %arg5[%c1, %c0_1] : memref<3x32xf32, #tpu.memory_space<vmem>>, vector<1x32xf32>
    %c2 = arith.constant 2 : index
    %c0_2 = arith.constant 0 : index
    %2 = vector.load %arg5[%c2, %c0_2] : memref<3x32xf32, #tpu.memory_space<vmem>>, vector<1x4xf32>
    %c0_3 = arith.constant 0 : index
    %c0_4 = arith.constant 0 : index
    %3 = vector.load %arg1[%c0_3, %c0_4] : memref<8x16xf32, #tpu.memory_space<vmem>>, vector<8x16xf32>
    %4 = arith.truncf %3 : vector<8x16xf32> to vector<8x16xbf16>
    %c0_5 = arith.constant 0 : index
    %c0_6 = arith.constant 0 : index
    %5 = vector.load %arg2[%c0_5, %c0_6] : memref<16x32xbf16, #tpu.memory_space<vmem>>, vector<16x32xbf16>
    %cst = arith.constant dense<0.000000e+00> : vector<8x32xf32>
    %6 = tpu.matmul %4, %5, %cst {dimension_numbers = #tpu.dot_dimension_numbers<[1], [0], [0], [1], [0, 0, 1, 1], [], []>} : vector<8x16xbf16>, vector<16x32xbf16>, vector<8x32xf32> -> vector<8x32xf32>
    %7 = vector.broadcast %0 : vector<1x32xf32> to vector<8x32xf32>
    %8 = arith.addf %6, %7 : vector<8x32xf32>
    %cst_7 = arith.constant 0.000000e+00 : f32
    %9 = vector.broadcast %cst_7 : f32 to vector<8x32xf32>
    %10 = arith.maximumf %8, %9 : vector<8x32xf32>
    %11 = arith.truncf %10 : vector<8x32xf32> to vector<8x32xbf16>
    %c0_8 = arith.constant 0 : index
    %c0_9 = arith.constant 0 : index
    %12 = vector.load %arg3[%c0_8, %c0_9] : memref<32x32xbf16, #tpu.memory_space<vmem>>, vector<32x32xbf16>
    %cst_10 = arith.constant dense<0.000000e+00> : vector<8x32xf32>
    %13 = tpu.matmul %11, %12, %cst_10 {dimension_numbers = #tpu.dot_dimension_numbers<[1], [0], [0], [1], [0, 0, 1, 1], [], []>} : vector<8x32xbf16>, vector<32x32xbf16>, vector<8x32xf32> -> vector<8x32xf32>
    %14 = vector.broadcast %1 : vector<1x32xf32> to vector<8x32xf32>
    %15 = arith.addf %13, %14 : vector<8x32xf32>
    %cst_11 = arith.constant 0.000000e+00 : f32
    %16 = vector.broadcast %cst_11 : f32 to vector<8x32xf32>
    %17 = arith.maximumf %15, %16 : vector<8x32xf32>
    %18 = arith.truncf %17 : vector<8x32xf32> to vector<8x32xbf16>
    %c0_12 = arith.constant 0 : index
    %c0_13 = arith.constant 0 : index
    %19 = vector.load %arg4[%c0_12, %c0_13] : memref<32x4xbf16, #tpu.memory_space<vmem>>, vector<32x4xbf16>
    %cst_14 = arith.constant dense<0.000000e+00> : vector<8x4xf32>
    %20 = tpu.matmul %18, %19, %cst_14 {dimension_numbers = #tpu.dot_dimension_numbers<[1], [0], [0], [1], [0, 0, 1, 1], [], []>} : vector<8x32xbf16>, vector<32x4xbf16>, vector<8x4xf32> -> vector<8x4xf32>
    %21 = vector.broadcast %2 : vector<1x4xf32> to vector<8x4xf32>
    %22 = arith.addf %20, %21 : vector<8x4xf32>
    %23 = math.tanh %22 : vector<8x4xf32>
    %c0_15 = arith.constant 0 : index
    %c0_16 = arith.constant 0 : index
    %24 = vector.load %arg6[%c0_15, %c0_16] : memref<8x4xf32, #tpu.memory_space<vmem>>, vector<8x4xf32>
    tpu.vector_store %arg6[%c0_15, %c0_16], %23 {strides = array<i32>} : memref<8x4xf32, #tpu.memory_space<vmem>>, vector<8x4xf32>,
    return
  }
  func.func @transform_0(%arg0: i32) -> (i32, i32) {
    %c0_i32 = arith.constant 0 : i32
    %c0_i32_0 = arith.constant 0 : i32
    return %arg0, %c0_i32 : i32, i32
  }
  func.func @transform_1(%arg0: i32) -> (i32, i32) {
    %c0_i32 = arith.constant 0 : i32
    %c0_i32_0 = arith.constant 0 : i32
    %c0_i32_1 = arith.constant 0 : i32
    return %c0_i32, %c0_i32_0 : i32, i32
  }
  func.func @transform_2(%arg0: i32) -> (i32, i32) {
    %c0_i32 = arith.constant 0 : i32
    %c0_i32_0 = arith.constant 0 : i32
    %c0_i32_1 = arith.constant 0 : i32
    return %c0_i32, %c0_i32_0 : i32, i32
  }
  func.func @transform_3(%arg0: i32) -> (i32, i32) {
    %c0_i32 = arith.constant 0 : i32
    %c0_i32_0 = arith.constant 0 : i32
    %c0_i32_1 = arith.constant 0 : i32
    return %c0_i32, %c0_i32_0 : i32, i32
  }
  func.func @transform_4(%arg0: i32) -> (i32, i32) {
    %c0_i32 = arith.constant 0 : i32
    %c0_i32_0 = arith.constant 0 : i32
    %c0_i32_1 = arith.constant 0 : i32
    return %c0_i32, %c0_i32_0 : i32, i32
  }
  func.func @transform_5(%arg0: i32) -> (i32, i32) {
    %c0_i32 = arith.constant 0 : i32
    %c0_i32_0 = arith.constant 0 : i32
    return %arg0, %c0_i32 : i32, i32
  }
}

</mosaic_0001>

<llo_original>
// kernel: actor_forward.1
$region0: #{actor_forward.1}
  #allocation0 [shape = 'u32[]', space=smem, size = 0x4, offset = 0x4, fixed_abs, tag = 'smem constant byte address 0x4 - core index']
  #allocation1 [shape = 'u32[144,128]{1,0:T(1,128)}', space=vmem, size = 0x12000, scoped, tag = 'internal scratch']
  %s0 = inlined_call_operand.vmem [shape: f32[8,16], index: 0, kind: input, shape index: {}]
  %s1 = inlined_call_operand.vmem [shape: bf16[16,32], index: 1, kind: input, shape index: {}]
  %s2 = inlined_call_operand.vmem [shape: bf16[32,32], index: 2, kind: input, shape index: {}]
  %s3 = inlined_call_operand.vmem [shape: bf16[32,4], index: 3, kind: input, shape index: {}]
  %s4 = inlined_call_operand.vmem [shape: f32[3,32], index: 4, kind: input, shape index: {}]
  %s5 = inlined_call_operand.vmem [shape: f32[8,4], index: 5, kind: output, shape index: {}]
  %s6 = sld [smem:[#allocation0]]
  $region30: #{actor_forward.1} parent=0
    _
  %s8 = ssub.s32 1, %s6
  %s9 = scalar_select 0, %s8, %s6
  // Predicated region
  $region2: #{actor_forward.1} parent=0 // pred_check
    _
  $region3: #{actor_forward.1} parent=0 // pred_check_branch
    %11 = sbr.rel (0) target = $region5
  $region4: #{actor_forward.1} parent=0 // pred_region
    _
  $region5: #{actor_forward.1} parent=0 // pred_fallthru
    _
  // Predicated region
  $region6: #{actor_forward.1} parent=0 // pred_check
    _
  $region7: #{actor_forward.1} parent=0 // pred_check_branch
    %13 = sbr.rel (0) target = $region9
  $region8: #{actor_forward.1} parent=0 // pred_region
    _
  $region9: #{actor_forward.1} parent=0 // pred_fallthru
    _
  // Predicated region
  $region10: #{actor_forward.1} parent=0 // pred_check
    _
  $region11: #{actor_forward.1} parent=0 // pred_check_branch
    %15 = sbr.rel (0) target = $region13
  $region12: #{actor_forward.1} parent=0 // pred_region
    _
  $region13: #{actor_forward.1} parent=0 // pred_fallthru
    _
  // Predicated region
  $region14: #{actor_forward.1} parent=0 // pred_check
    _
  $region15: #{actor_forward.1} parent=0 // pred_check_branch
    %17 = sbr.rel (0) target = $region17
  $region16: #{actor_forward.1} parent=0 // pred_region
    _
  $region17: #{actor_forward.1} parent=0 // pred_fallthru
    _
  // Predicated region
  $region18: #{actor_forward.1} parent=0 // pred_check
    _
  $region19: #{actor_forward.1} parent=0 // pred_check_branch
    %19 = sbr.rel (0) target = $region21
  $region20: #{actor_forward.1} parent=0 // pred_region
    _
  $region21: #{actor_forward.1} parent=0 // pred_fallthru
    _
  %v21 = vld [vmem:[%s4] sm:$0x1]
  %v22 = vld [vmem:[%s4 + $0x1] sm:$0x1]
  %v23 = vld [vmem:[%s4 + $0x2] sm:$0x1]
  %v24 = vld [vmem:[%s0] sm:$0xff]
  %v25 = vpack.c.bf16 %v24, %v24
  %v26 = vld [vmem:[%s1] sm:$0xf]
  %v27 = vld [vmem:[%s1 + $0x4] sm:$0xf]
  %v28 = vlaneseq
  %v29 = vshrl.u32 %v28, 7
  %v30 = vsub.s32 0, %v29
  %v31 = vrot.slane %v21, %v30
  %v34 = vunpack.c.l.b16 %v26
  %v35 = vunpack.c.l.b16 %v27
  %v36 = vpack.c.b16 %v35, %v34
  %vm38 = vcmask 130048
  %v40 = vsel %vm38, %v25, 0
  %42 = vmatprep.subr.bf16.mxu0 0
  %43 = vmatpush1.bf16.msra.mxu0 %v36
  %44 = vmatprep.subr.bf16.mxu0 0
  %45 = vmatpush1.bf16.msra.mxu0 0
  %46 = vmatprep.subr.bf16.mxu0 0
  %47 = vmatpush1.bf16.msra.mxu0 0
  %48 = vmatprep.subr.bf16.mxu0 0
  %49 = vmatpush1.bf16.msra.mxu0 0
  %50 = vmatprep.subr.bf16.mxu0 0
  %51 = vmatpush1.bf16.msra.mxu0 0
  %52 = vmatprep.subr.bf16.mxu0 0
  %53 = vmatpush1.bf16.msra.mxu0 0
  %54 = vmatprep.subr.bf16.mxu0 0
  %55 = vmatpush1.bf16.msra.mxu0 0
  %56 = vmatprep.subr.bf16.mxu0 0
  %57 = vmatpush1.bf16.msra.mxu0 0
  %58 = vmatprep.subr.bf16.mxu0 0
  %59 = vmatpush1.bf16.msra.mxu0 0
  %60 = vmatprep.subr.bf16.mxu0 0
  %61 = vmatpush1.bf16.msra.mxu0 0
  %62 = vmatprep.subr.bf16.mxu0 0
  %63 = vmatpush1.bf16.msra.mxu0 0
  %64 = vmatprep.subr.bf16.mxu0 0
  %65 = vmatpush1.bf16.msra.mxu0 0
  %66 = vmatprep.subr.bf16.mxu0 0
  %67 = vmatpush1.bf16.msra.mxu0 0
  %68 = vmatprep.subr.bf16.mxu0 0
  %69 = vmatpush1.bf16.msra.mxu0 0
  %70 = vmatprep.subr.bf16.mxu0 0
  %71 = vmatpush1.bf16.msra.mxu0 0
  %72 = vmatprep.subr.bf16.mxu0 0
  %73 = vmatpush1.bf16.msra.mxu0 0
  %74 = vmatprep.mubr.bf16.mxu0 0
  %75 = vmatmul.mubr.bf16.gmra.mrb[0].mxu0 %v40
  %v76 = vpop.f32.mrb[0].mxu0
  %v77 = vadd.f32 %v31, %v76
  %v78 = vpop.f32.mrb[0].mxu0
  %v79 = vpop.f32.mrb[0].mxu0
  %v80 = vpop.f32.mrb[0].mxu0
  %81 = vdwg.mxu0
  %v82 = vmax.f32 %v77, 0.0
  %v83 = vpack.c.bf16 %v82, %v82
  %v84 = vld [vmem:[%s2] sm:$0xf]
  %v85 = vld [vmem:[%s2 + $0x4] sm:$0xf]
  %v86 = vld [vmem:[%s2 + $0x8] sm:$0xf]
  %v87 = vld [vmem:[%s2 + $0xc] sm:$0xf]
  %v88 = vlaneseq
  %v89 = vshrl.u32 %v88, 7
  %v90 = vsub.s32 0, %v89
  %v91 = vrot.slane %v22, %v90
  %v96 = vunpack.c.l.b16 %v84
  %v97 = vunpack.c.l.b16 %v85
  %v98 = vunpack.c.l.b16 %v86
  %v99 = vunpack.c.l.b16 %v87
  %v100 = vpack.c.b16 %v97, %v96
  %v101 = vpack.c.b16 %v99, %v98
  %vm104 = vcmask 261120
  %v106 = vsel %vm104, %v83, 0
  %108 = vmatprep.subr.bf16.mxu0 0
  %109 = vmatpush1.bf16.msra.mxu0 %v100
  %110 = vmatprep.subr.bf16.mxu0 0
  %111 = vmatpush1.bf16.msra.mxu0 %v101
  %112 = vmatprep.subr.bf16.mxu0 0
  %113 = vmatpush1.bf16.msra.mxu0 0
  %114 = vmatprep.subr.bf16.mxu0 0
  %115 = vmatpush1.bf16.msra.mxu0 0
  %116 = vmatprep.subr.bf16.mxu0 0
  %117 = vmatpush1.bf16.msra.mxu0 0
  %118 = vmatprep.subr.bf16.mxu0 0
  %119 = vmatpush1.bf16.msra.mxu0 0
  %120 = vmatprep.subr.bf16.mxu0 0
  %121 = vmatpush1.bf16.msra.mxu0 0
  %122 = vmatprep.subr.bf16.mxu0 0
  %123 = vmatpush1.bf16.msra.mxu0 0
  %124 = vmatprep.subr.bf16.mxu0 0
  %125 = vmatpush1.bf16.msra.mxu0 0
  %126 = vmatprep.subr.bf16.mxu0 0
  %127 = vmatpush1.bf16.msra.mxu0 0
  %128 = vmatprep.subr.bf16.mxu0 0
  %129 = vmatpush1.bf16.msra.mxu0 0
  %130 = vmatprep.subr.bf16.mxu0 0
  %131 = vmatpush1.bf16.msra.mxu0 0
  %132 = vmatprep.subr.bf16.mxu0 0
  %133 = vmatpush1.bf16.msra.mxu0 0
  %134 = vmatprep.subr.bf16.mxu0 0
  %135 = vmatpush1.bf16.msra.mxu0 0
  %136 = vmatprep.subr.bf16.mxu0 0
  %137 = vmatpush1.bf16.msra.mxu0 0
  %138 = vmatprep.subr.bf16.mxu0 0
  %139 = vmatpush1.bf16.msra.mxu0 0
  %140 = vmatprep.mubr.bf16.mxu0 0
  %141 = vmatmul.mubr.bf16.gmra.mrb[0].mxu0 %v106
  %v142 = vpop.f32.mrb[0].mxu0
  %v143 = vadd.f32 %v91, %v142
  %v144 = vpop.f32.mrb[0].mxu0
  %v145 = vpop.f32.mrb[0].mxu0
  %v146 = vpop.f32.mrb[0].mxu0
  %147 = vdwg.mxu0
  %v148 = vmax.f32 %v143, 0.0
  %v149 = vpack.c.bf16 %v148, %v148
  %v150 = vld [vmem:[%s3] sm:$0xf]
  %v151 = vld [vmem:[%s3 + $0x4] sm:$0xf]
  %v152 = vld [vmem:[%s3 + $0x8] sm:$0xf]
  %v153 = vld [vmem:[%s3 + $0xc] sm:$0xf]
  %v154 = vlaneseq
  %v155 = vshrl.u32 %v154, 7
  %v156 = vsub.s32 0, %v155
  %v157 = vrot.slane %v23, %v156
  %v162 = vunpack.c.l.b16 %v150
  %v163 = vunpack.c.l.b16 %v151
  %v164 = vunpack.c.l.b16 %v152
  %v165 = vunpack.c.l.b16 %v153
  %v166 = vpack.c.b16 %v163, %v162
  %v167 = vpack.c.b16 %v165, %v164
  %v171 = vsel %vm104, %v149, 0
  %173 = vmatprep.subr.bf16.mxu0 0
  %174 = vmatpush1.bf16.msra.mxu0 %v166
  %175 = vmatprep.subr.bf16.mxu0 0
  %176 = vmatpush1.bf16.msra.mxu0 %v167
  %177 = vmatprep.subr.bf16.mxu0 0
  %178 = vmatpush1.bf16.msra.mxu0 0
  %179 = vmatprep.subr.bf16.mxu0 0
  %180 = vmatpush1.bf16.msra.mxu0 0
  %181 = vmatprep.subr.bf16.mxu0 0
  %182 = vmatpush1.bf16.msra.mxu0 0
  %183 = vmatprep.subr.bf16.mxu0 0
  %184 = vmatpush1.bf16.msra.mxu0 0
  %185 = vmatprep.subr.bf16.mxu0 0
  %186 = vmatpush1.bf16.msra.mxu0 0
  %187 = vmatprep.subr.bf16.mxu0 0
  %188 = vmatpush1.bf16.msra.mxu0 0
  %189 = vmatprep.subr.bf16.mxu0 0
  %190 = vmatpush1.bf16.msra.mxu0 0
  %191 = vmatprep.subr.bf16.mxu0 0
  %192 = vmatpush1.bf16.msra.mxu0 0
  %193 = vmatprep.subr.bf16.mxu0 0
  %194 = vmatpush1.bf16.msra.mxu0 0
  %195 = vmatprep.subr.bf16.mxu0 0
  %196 = vmatpush1.bf16.msra.mxu0 0
  %197 = vmatprep.subr.bf16.mxu0 0
  %198 = vmatpush1.bf16.msra.mxu0 0
  %199 = vmatprep.subr.bf16.mxu0 0
  %200 = vmatpush1.bf16.msra.mxu0 0
  %201 = vmatprep.subr.bf16.mxu0 0
  %202 = vmatpush1.bf16.msra.mxu0 0
  %203 = vmatprep.subr.bf16.mxu0 0
  %204 = vmatpush1.bf16.msra.mxu0 0
  %205 = vmatprep.mubr.bf16.mxu0 0
  %206 = vmatmul.mubr.bf16.gmra.mrb[0].mxu0 %v171
  %v207 = vpop.f32.mrb[0].mxu0
  %v208 = vadd.f32 %v157, %v207
  %v209 = vpop.f32.mrb[0].mxu0
  %v210 = vpop.f32.mrb[0].mxu0
  %v211 = vpop.f32.mrb[0].mxu0
  %212 = vdwg.mxu0
  %v213 = vtanh.pop %v208
  %vm214 = vcmask 31744
  %215 = vst.msk [vmem:[%s5] sm:$0xff] %vm214, %v213
  // Predicated region
  $region22: #{actor_forward.1} parent=0 // pred_check
    _
  $region23: #{actor_forward.1} parent=0 // pred_check_branch
    %217 = sbr.rel (0) target = $region25
  $region24: #{actor_forward.1} parent=0 // pred_region
    _
  $region25: #{actor_forward.1} parent=0 // pred_fallthru
    _
  // Predicated region
  $region26: #{actor_forward.1} parent=0 // pred_check
    _
  $region27: #{actor_forward.1} parent=0 // pred_check_branch
    %219 = sbr.rel (0) target = $region29
  $region28: #{actor_forward.1} parent=0 // pred_region
    _
  $region29: #{actor_forward.1} parent=0 // pred_fallthru
    _

</llo_original>
